<compile_context>
chip_gen: v6e
topology: v6e:2x2x1
jax: 0.10.0
libtpu: 0.0.40
codegen_flags: <defaults>
</compile_context>

<pallas_src>
from functools import partial

import numpy as np
import jax
import jax.numpy as jnp
from jax.experimental import pallas as pl
from jax.experimental.pallas import tpu as pltpu


_LANE = 128        # TPU vreg lane width
_ROW_TILE = 512    # rows of 128 lanes per pipelined tile (256 KiB / input tile)
_EPS = 1e-6


# --------------------------- score preparation ------------------------------

def _scores_from_logit(logit):
    """Per-sample score s with sigmoid(s) == torch pred:
       sigmoid(logit) for 1-D / (N,1) logits; softmax(logit, 1)[:, 1] for (N,C)."""
    logit = jnp.asarray(logit)
    if logit.ndim == 1:
        logit = logit.reshape(-1, 1)
    if logit.shape[1] == 1:
        return logit[:, 0].astype(jnp.float32)
    if logit.shape[1] == 2:
        # softmax([x0, x1])[1] == sigmoid(x1 - x0), exactly.
        return (logit[:, 1] - logit[:, 0]).astype(jnp.float32)
    # General C > 2: softmax(x)[1] == sigmoid(x1 - logsumexp(x without column 1)).
    rest = jnp.concatenate([logit[:, :1], logit[:, 2:]], axis=1)
    return (logit[:, 1] - jax.nn.logsumexp(rest, axis=1)).astype(jnp.float32)


# ---------------------- lane-dense elementwise sigmoid -----------------------

def _sigmoid_tile_kernel(x_ref, o_ref):
    # sigmoid(x) = 0.5 * (tanh(x/2) + 1): one EUP op, no inf intermediates.
    x = x_ref[...].astype(jnp.float32)
    o_ref[...] = (0.5 * (jnp.tanh(0.5 * x) + 1.0)).astype(o_ref.dtype)


def _sigmoid_lanedense(scores):
    """sigmoid over a 1-D score vector on a lane-dense (rows, 128) layout."""
    n = scores.shape[0]
    r = max(pl.cdiv(n, _LANE), 1)
    if r <= _ROW_TILE:                 # single block, full dims
        tr, rpad, steps = r, r, 1
    else:                              # 512-row (256 KiB) tiles, pipelined
        tr = _ROW_TILE
        rpad = tr * pl.cdiv(r, tr)
        steps = rpad // tr
    npad = rpad * _LANE
    s = jnp.pad(scores.astype(jnp.float32), (0, npad - n)).reshape(rpad, _LANE)
    out = pl.pallas_call(
        _sigmoid_tile_kernel,
        out_shape=jax.ShapeDtypeStruct((rpad, _LANE), jnp.float32),
        grid=(steps,),
        in_specs=[pl.BlockSpec((tr, _LANE), lambda i: (i, 0))],
        out_specs=pl.BlockSpec((tr, _LANE), lambda i: (i, 0)),
        compiler_params=pltpu.CompilerParams(dimension_semantics=("parallel",)),
    )(s)
    return out.reshape(-1)[:n]


# -------------------- fused TPAUC moment kernel (O(N)) -----------------------
#
# Output rows of the (8, 128) per-lane accumulator:
#   0: A0 = sum_P w_p              3: B0 = sum_N w_n
#   1: A1 = sum_P w_p * p          4: B1 = sum_N w_n * (1 + p)
#   2: A2 = sum_P w_p * p^2        5: B2 = sum_N w_n * (1 + p)^2
#   6: n_plus (valid positives)    7: n_minus (valid negatives)

def _make_moment_kernel(n_total, gamma, eps, scheme, use_reweight, tile_rows):
    n_total = int(n_total)
    gamma = float(gamma)
    eps = float(eps)

    def kernel(s_ref, t_ref, mom_ref):
        i = pl.program_id(0)

        @pl.when(i == 0)
        def _init():
            mom_ref[...] = jnp.zeros_like(mom_ref)

        s = s_ref[...].astype(jnp.float32)          # (TR, 128) raw scores
        t = t_ref[...].astype(jnp.float32)          # (TR, 128) targets (0/1)

        # Padding mask from an in-kernel iota (no extra HBM mask arrays).
        row_id = jax.lax.broadcasted_iota(jnp.int32, s.shape, 0)
        lane_id = jax.lax.broadcasted_iota(jnp.int32, s.shape, 1)
        gidx = i * (tile_rows * _LANE) + row_id * _LANE + lane_id
        valid = gidx < n_total

        pos = jnp.where(valid & (t == 1.0), 1.0, 0.0).astype(jnp.float32)
        neg = jnp.where(valid & (t != 1.0), 1.0, 0.0).astype(jnp.float32)

        # Fused preprocess: pred = sigmoid(score)  (EUP tanh form).
        p = 0.5 * (jnp.tanh(0.5 * s) + 1.0)

        if not use_reweight:                        # epoch < epoch_to_paced
            wp = pos
            wn = neg
        elif scheme == "Poly":
            # pow(x, gamma) == exp(gamma * log(x)); arguments strictly positive.
            wp = jnp.exp(gamma * jnp.log(1.0 - p + eps)) * pos
            wn = jnp.exp(gamma * jnp.log(p + eps)) * neg
        else:                                       # "Exp"
            wp = (1.0 - jnp.exp(-gamma * (1.0 - p))) * pos
            wn = (1.0 - jnp.exp(-gamma * p)) * neg

        a = 1.0 + p

        # Accumulate per-lane partial moments into the resident output block.
        mom_ref[0:1, :] += jnp.sum(wp, axis=0, keepdims=True)
        mom_ref[1:2, :] += jnp.sum(wp * p, axis=0, keepdims=True)
        mom_ref[2:3, :] += jnp.sum(wp * p * p, axis=0, keepdims=True)
        mom_ref[3:4, :] += jnp.sum(wn, axis=0, keepdims=True)
        mom_ref[4:5, :] += jnp.sum(wn * a, axis=0, keepdims=True)
        mom_ref[5:6, :] += jnp.sum(wn * a * a, axis=0, keepdims=True)
        mom_ref[6:7, :] += jnp.sum(pos, axis=0, keepdims=True)
        mom_ref[7:8, :] += jnp.sum(neg, axis=0, keepdims=True)

    return kernel


def _tpauc_moments(scores, target_f, *, gamma, scheme, use_reweight, eps=_EPS):
    n = scores.shape[0]
    r = max(pl.cdiv(n, _LANE), 1)
    if r <= _ROW_TILE:
        tr, rpad, steps = r, r, 1
    else:
        tr = _ROW_TILE
        rpad = tr * pl.cdiv(r, tr)
        steps = rpad // tr
    npad = rpad * _LANE
    s = jnp.pad(scores.astype(jnp.float32), (0, npad - n)).reshape(rpad, _LANE)
    t = jnp.pad(target_f.astype(jnp.float32), (0, npad - n)).reshape(rpad, _LANE)
    mom = pl.pallas_call(
        _make_moment_kernel(n, gamma, eps, scheme, use_reweight, tr),
        out_shape=jax.ShapeDtypeStruct((8, _LANE), jnp.float32),
        grid=(steps,),
        in_specs=[pl.BlockSpec((tr, _LANE), lambda i: (i, 0)),
                  pl.BlockSpec((tr, _LANE), lambda i: (i, 0))],
        out_specs=pl.BlockSpec((8, _LANE), lambda i: (0, 0)),
        compiler_params=pltpu.CompilerParams(dimension_semantics=("arbitrary",)),
    )(s, t)
    return jnp.sum(mom, axis=1)                    # (8,) scalars


@partial(jax.jit,
         static_argnames=("gamma", "scheme", "use_reweight", "reduction", "eps"))
def _tpauc_loss_device(scores, target_f, *, gamma, scheme, use_reweight,
                       reduction, eps=_EPS):
    m = _tpauc_moments(scores, target_f, gamma=gamma, scheme=scheme,
                       use_reweight=use_reweight, eps=eps)
    loss_sum = m[0] * m[5] - 2.0 * m[1] * m[4] + m[2] * m[3]
    if reduction == "mean":
        return loss_sum / (m[6] * m[7])
    return loss_sum


# ------------------------------- modules -------------------------------------

class BaseLoss:
    """JAX/Pallas port of the PyTorch BaseLoss module."""

    def __init__(self):
        pass

    @staticmethod
    def _validate_target(target):
        # Host-side validation matching the torch RuntimeErrors (forces a device
        # sync; pass validate=False on hot training paths to skip it).
        t = np.asarray(jax.device_get(target))
        n_unique = len(np.unique(t))
        if n_unique > 2:
            raise RuntimeError(
                'Class Number Greater than Two: only binary class problems are supported')
        if n_unique == 1:
            raise RuntimeError(
                'One Class Missing: AUC evaluation requires both classes in the mini-batch')
        if t.ndim == 2 and t.shape[1] > 1:
            raise RuntimeError('Label Output Should be a Vector')

    def preprocess_inputs(self, logit, target, validate=True):
        if validate:
            self._validate_target(target)
        scores = _scores_from_logit(logit)
        pred = _sigmoid_lanedense(scores)     # == sigmoid(logit) / softmax(logit,1)[:,1]
        return jnp.squeeze(pred), target

    def forward(self, logit, target, **kwargs):
        # Abstract in the reference module.
        pass

    def __call__(self, *args, **kwargs):
        return self.forward(*args, **kwargs)


class TPAUCLoss(BaseLoss):

    def __init__(self, gamma, epoch_to_paced, re_scheme, num_class=2, norm=False,
                 reduction='mean', **kwargs):
        super().__init__()
        self.gamma = gamma
        assert num_class == 2, 'must be binary classification task'
        self.num_class = num_class
        self.reduction = reduction
        self.epoch_to_paced = epoch_to_paced
        if re_scheme not in ['Exp', 'Poly']:
            raise ValueError
        self.re_scheme = re_scheme
        self.norm = norm

    def forward(self, logit, target, epoch=0, validate=True):
        if validate:
            self._validate_target(target)
        logit = jnp.asarray(logit)
        tvec = jnp.reshape(jnp.asarray(target), (-1,)).astype(jnp.float32)
        scores = _scores_from_logit(logit)        # sigmoid applied inside the kernel
        use_reweight = bool(epoch >= self.epoch_to_paced)
        return _tpauc_loss_device(
            scores, tvec,
            gamma=float(self.gamma), scheme=self.re_scheme,
            use_reweight=use_reweight, reduction=self.reduction, eps=_EPS)

    def re_weight(self, pred_p, pred_n, eps=1e-6):
        # API-parity helper; the Pallas forward fuses this into the moment kernel.
        if self.re_scheme == 'Poly':
            col = (1.0 - pred_p + eps) ** self.gamma
            row = (pred_n + eps) ** self.gamma
        elif self.re_scheme == 'Exp':
            col = 1.0 - jnp.exp(-self.gamma * (1.0 - pred_p))
            row = 1.0 - jnp.exp(-self.gamma * pred_n)
        else:
            raise ValueError
        return jnp.outer(col, row)


# ------------------------------ references -----------------------------------

def _ref_pred(logit):
    logit = jnp.asarray(logit)
    if logit.ndim == 1:
        logit = logit.reshape(-1, 1)
    if logit.shape[1] > 1:
        return jax.nn.softmax(logit, axis=1)[:, 1]
    return jax.nn.sigmoid(logit[:, 0])


def _ref_tpauc(logit, target, *, gamma, scheme, epoch, epoch_to_paced,
               reduction="mean", eps=1e-6):
    """Direct O(N^2) pairwise reference (only usable at small/medium N)."""
    pred = _ref_pred(logit)
    t = jnp.reshape(jnp.asarray(target), (-1,))
    pred_p = pred[t == 1]
    pred_n = pred[t != 1]
    if epoch >= epoch_to_paced:
        if scheme == "Poly":
            col = (1.0 - pred_p + eps) ** gamma
            row = (pred_n + eps) ** gamma
        else:
            col = 1.0 - jnp.exp(-gamma * (1.0 - pred_p))
            row = 1.0 - jnp.exp(-gamma * pred_n)
        w = jnp.outer(col, row)
    else:
        w = jnp.ones((pred_p.shape[0], pred_n.shape[0]), jnp.float32)
    delta = (1.0 + pred_n[None, :] - pred_p[:, None]) ** 2
    loss = delta * w
    return loss.mean() if reduction == "mean" else loss.sum()


def _ref_tpauc_np64(logit_1d, target, *, gamma, scheme, epoch, epoch_to_paced,
                    reduction="mean", eps=1e-6):
    """float64 numpy reference via the separable formula (for large N)."""
    x = np.asarray(logit_1d, dtype=np.float64)
    p = 1.0 / (1.0 + np.exp(-x))
    t = np.asarray(target, dtype=np.float64).reshape(-1)
    pp = p[t == 1.0]
    pn = p[t != 1.0]
    if epoch >= epoch_to_paced:
        if scheme == "Poly":
            col = (1.0 - pp + eps) ** gamma
            row = (pn + eps) ** gamma
        else:
            col = 1.0 - np.exp(-gamma * (1.0 - pp))
            row = 1.0 - np.exp(-gamma * pn)
    else:
        col = np.ones_like(pp)
        row = np.ones_like(pn)
    a = 1.0 + pn
    s = (col.sum() * (row * a * a).sum()
         - 2.0 * (col * pp).sum() * (row * a).sum()
         + (col * pp * pp).sum() * row.sum())
    if reduction == "mean":
        s = s / (pp.size * pn.size)
    return np.float64(s)


# --------------------------------- main ---------------------------------------

if __name__ == "__main__":
    key = jax.random.PRNGKey(0)
    k1, k2, k3, k4, k5 = jax.random.split(key, 5)

    # Small deterministic binary-classification batch.
    N, C = 8, 2
    logit_2d = jax.random.normal(k1, (N, C), dtype=jnp.float32)
    logit_1d = jax.random.normal(k2, (N,), dtype=jnp.float32)
    target = jnp.array([0, 1, 0, 1, 1, 0, 1, 0], dtype=jnp.float32)

    # --- preprocess_inputs (lane-dense sigmoid kernel) ---
    base = TPAUCLoss(gamma=1.5, epoch_to_paced=0, re_scheme="Exp")
    pred_sm, _ = base.preprocess_inputs(logit_2d, target)
    pred_sg, _ = base.preprocess_inputs(logit_1d, target)
    jax.block_until_ready((pred_sm, pred_sg))
    np.testing.assert_allclose(np.asarray(pred_sm),
                               np.asarray(jax.nn.softmax(logit_2d, axis=1)[:, 1]),
                               rtol=1e-5, atol=1e-6)
    np.testing.assert_allclose(np.asarray(pred_sg),
                               np.asarray(jax.nn.sigmoid(logit_1d)),
                               rtol=1e-5, atol=1e-6)

    # C > 2 preprocess path (general softmax column 1).
    logit_3c = jax.random.normal(k3, (N, 3), dtype=jnp.float32)
    pred_3c, _ = base.preprocess_inputs(logit_3c, target)
    jax.block_until_ready(pred_3c)
    np.testing.assert_allclose(np.asarray(pred_3c),
                               np.asarray(jax.nn.softmax(logit_3c, axis=1)[:, 1]),
                               rtol=1e-5, atol=1e-6)

    # --- fused TPAUCLoss forward: Exp / Poly re-weighting and plain weights ---
    cases = [
        dict(gamma=1.5, epoch_to_paced=0, re_scheme="Exp", reduction="mean", epoch=1),
        dict(gamma=2.0, epoch_to_paced=0, re_scheme="Poly", reduction="mean", epoch=3),
        dict(gamma=1.0, epoch_to_paced=5, re_scheme="Exp", reduction="sum", epoch=0),
    ]
    for cfg in cases:
        loss_mod = TPAUCLoss(gamma=cfg["gamma"], epoch_to_paced=cfg["epoch_to_paced"],
                             re_scheme=cfg["re_scheme"], reduction=cfg["reduction"])
        got = loss_mod.forward(logit_2d, target, epoch=cfg["epoch"])
        jax.block_until_ready(got)
        want = _ref_tpauc(logit_2d, target, gamma=cfg["gamma"], scheme=cfg["re_scheme"],
                          epoch=cfg["epoch"], epoch_to_paced=cfg["epoch_to_paced"],
                          reduction=cfg["reduction"])
        np.testing.assert_allclose(np.asarray(got), np.asarray(want),
                                   rtol=1e-4, atol=1e-5)

    # Medium batch: lane + sublane padding within a single tile.
    Nb = 600
    logit_b = jax.random.normal(k4, (Nb,), dtype=jnp.float32)
    tgt_b = (jax.random.uniform(jax.random.PRNGKey(1), (Nb,)) > 0.5).astype(jnp.float32)
    tgt_b = tgt_b.at[0].set(1.0).at[1].set(0.0)   # guarantee both classes present
    loss_mod = TPAUCLoss(gamma=1.5, epoch_to_paced=0, re_scheme="Exp", reduction="mean")
    got_b = loss_mod.forward(logit_b, tgt_b, epoch=2)
    jax.block_until_ready(got_b)
    want_b = _ref_tpauc(logit_b, tgt_b, gamma=1.5, scheme="Exp",
                        epoch=2, epoch_to_paced=0, reduction="mean")
    np.testing.assert_allclose(np.asarray(got_b), np.asarray(want_b),
                               rtol=1e-4, atol=1e-5)

    # Large batch exercising multiple pipelined grid tiles (4 x 512 rows).
    Nl = 200_000
    logit_l = jax.random.normal(k5, (Nl,), dtype=jnp.float32)
    tgt_l = (jax.random.uniform(jax.random.PRNGKey(2), (Nl,)) > 0.7).astype(jnp.float32)
    tgt_l = tgt_l.at[0].set(1.0).at[1].set(0.0)
    loss_mod = TPAUCLoss(gamma=2.0, epoch_to_paced=0, re_scheme="Poly", reduction="mean")
    got_l = loss_mod.forward(logit_l, tgt_l, epoch=1)
    jax.block_until_ready(got_l)
    want_l = _ref_tpauc_np64(np.asarray(logit_l), np.asarray(tgt_l), gamma=2.0,
                             scheme="Poly", epoch=1, epoch_to_paced=0, reduction="mean")
    np.testing.assert_allclose(np.asarray(got_l, dtype=np.float64), want_l, rtol=5e-4)

    # Same large batch, Exp scheme, sum reduction.
    loss_mod = TPAUCLoss(gamma=1.5, epoch_to_paced=0, re_scheme="Exp", reduction="sum")
    got_l2 = loss_mod.forward(logit_l, tgt_l, epoch=1)
    jax.block_until_ready(got_l2)
    want_l2 = _ref_tpauc_np64(np.asarray(logit_l), np.asarray(tgt_l), gamma=1.5,
                              scheme="Exp", epoch=1, epoch_to_paced=0, reduction="sum")
    np.testing.assert_allclose(np.asarray(got_l2, dtype=np.float64), want_l2, rtol=5e-4)

    print("KERNEL_OK")
</pallas_src>

<mosaic_0001>
module attributes {stable_mosaic.version = 11 : i64} {
  func.func @_sigmoid_tile_kernel(%arg0: i32, %arg1: memref<1x128xf32, #tpu.memory_space<vmem>>, %arg2: memref<1x128xf32, #tpu.memory_space<vmem>>) attributes {dimension_semantics = [#tpu.dimension_semantics<parallel>], iteration_bounds = array<i64: 1>, scalar_prefetch = 0 : i64, scratch_operands = 0 : i64, tpu.core_type = #tpu.core_type<tc>, window_params = [{transform_indices = @transform_0, window_bounds = array<i64: 1, 128>}, {transform_indices = @transform_1, window_bounds = array<i64: 1, 128>}]} {
    %c0 = arith.constant 0 : index
    %c0_0 = arith.constant 0 : index
    %0 = vector.load %arg1[%c0, %c0_0] : memref<1x128xf32, #tpu.memory_space<vmem>>, vector<1x128xf32>
    %cst = arith.constant 5.000000e-01 : f32
    %1 = vector.broadcast %cst : f32 to vector<1x128xf32>
    %2 = arith.mulf %1, %0 : vector<1x128xf32>
    %3 = math.tanh %2 : vector<1x128xf32>
    %cst_1 = arith.constant 1.000000e+00 : f32
    %4 = vector.broadcast %cst_1 : f32 to vector<1x128xf32>
    %5 = arith.addf %3, %4 : vector<1x128xf32>
    %cst_2 = arith.constant 5.000000e-01 : f32
    %6 = vector.broadcast %cst_2 : f32 to vector<1x128xf32>
    %7 = arith.mulf %6, %5 : vector<1x128xf32>
    %c0_3 = arith.constant 0 : index
    %c0_4 = arith.constant 0 : index
    %8 = vector.load %arg2[%c0_3, %c0_4] : memref<1x128xf32, #tpu.memory_space<vmem>>, vector<1x128xf32>
    tpu.vector_store %arg2[%c0_3, %c0_4], %7 {strides = array<i32>} : memref<1x128xf32, #tpu.memory_space<vmem>>, vector<1x128xf32>,
    return
  }
  func.func @transform_0(%arg0: i32) -> (i32, i32) {
    %c0_i32 = arith.constant 0 : i32
    %c0_i32_0 = arith.constant 0 : i32
    return %arg0, %c0_i32 : i32, i32
  }
  func.func @transform_1(%arg0: i32) -> (i32, i32) {
    %c0_i32 = arith.constant 0 : i32
    %c0_i32_0 = arith.constant 0 : i32
    return %arg0, %c0_i32 : i32, i32
  }
}

</mosaic_0001>

<llo_original>
// kernel: tpu_custom_call.1
$region0: #{tpu_custom_call.1}
  #allocation0 [shape = 'u32[]', space=smem, size = 0x4, offset = 0x4, fixed_abs, tag = 'smem constant byte address 0x4 - core index']
  #allocation1 [shape = 'u32[144,128]{1,0:T(1,128)}', space=vmem, size = 0x12000, scoped, tag = 'internal scratch']
  %s0 = inlined_call_operand.hbm [shape: f32[1,128], index: 0, kind: input, shape index: {}]
  %s1 = inlined_call_operand.hbm [shape: f32[1,128], index: 1, kind: output, shape index: {}]
  %s2 = sld [smem:[#allocation0]]
  $region18: #{tpu_custom_call.1} parent=0
    _
  %s4 = ssub.s32 1, %s2
  %s5 = scalar_select 0, %s4, %s2
  $region1: #{tpu_custom_call.1} parent=0
    #allocation2 [shape = 'u8[512]{0}', space=vmem, size = 0x400, scoped, tag = 'input window, operand 0, single buffered']
    #allocation3 [shape = 's32[1]{0}', space=sflag, size = 0x4, scoped, tag = 'scoped memory for tpu_custom_call.1']
    #allocation4 [shape = 's32[1]{0}', space=sflag, size = 0x4, scoped, tag = 'scoped memory for tpu_custom_call.1']
    #allocation5 [shape = 'u8[512]{0}', space=vmem, size = 0x400, scoped, tag = 'output window, operand 0, single buffered']
    %6 = vsyncpa [#allocation3], 0
    %7 = vsyncpa [#allocation4], 0
    // Predicated region
    $region2: #{tpu_custom_call.1} parent=1 // pred_check
      _
    $region3: #{tpu_custom_call.1} parent=1 // pred_check_branch
      %9 = sbr.rel (0) target = $region5
    $region4: #{tpu_custom_call.1} parent=1 // pred_region
      %s11 = ssub.s32 16, 16
      %12 = vsyncadd [#allocation3], %s11
      %s14 = sshll.u32 [#allocation2], 4
      %s15 = int_to_ptr.vmem [resolvable:$true] %s14
      %17 = dma.hbm_to_vmem [thread:$0]  %s0, 16, %s15, [#allocation3]
    $region5: #{tpu_custom_call.1} parent=1 // pred_fallthru
      _
    // Predicated region
    $region6: #{tpu_custom_call.1} parent=1 // pred_check
      _
    $region7: #{tpu_custom_call.1} parent=1 // pred_check_branch
      %19 = sbr.rel (0) target = $region9
    $region8: #{tpu_custom_call.1} parent=1 // pred_region
      %20 = dma.done [#allocation3], 16
    $region9: #{tpu_custom_call.1} parent=1 // pred_fallthru
      _
    %v21 = vld [vmem:[#allocation2] sm:$0x1]
    %v22 = vmul.f32 %v21, 0.5
    %v23 = vtanh.pop %v22
    %v24 = vadd.f32 %v23, 1.0
    %v25 = vmul.f32 %v24, 0.5
    %26 = vst [vmem:[#allocation5] sm:$0x1] %v25
    // Predicated region
    $region10: #{tpu_custom_call.1} parent=1 // pred_check
      _
    $region11: #{tpu_custom_call.1} parent=1 // pred_check_branch
      %28 = sbr.rel (0) target = $region13
    $region12: #{tpu_custom_call.1} parent=1 // pred_region
      %s30 = ssub.s32 16, 16
      %31 = vsyncadd [#allocation4], %s30
      %s33 = sshll.u32 [#allocation5], 4
      %s34 = int_to_ptr.vmem [resolvable:$true] %s33
      %36 = dma.vmem_to_hbm [thread:$0]  %s34, 16, %s1, [#allocation4]
    $region13: #{tpu_custom_call.1} parent=1 // pred_fallthru
      _
    // Predicated region
    $region14: #{tpu_custom_call.1} parent=1 // pred_check
      _
    $region15: #{tpu_custom_call.1} parent=1 // pred_check_branch
      %38 = sbr.rel (0) target = $region17
    $region16: #{tpu_custom_call.1} parent=1 // pred_region
      %39 = dma.done [#allocation4], 16
    $region17: #{tpu_custom_call.1} parent=1 // pred_fallthru
      _
    %40 = vsyncpa [#allocation3], 1
    %41 = vsyncpa [#allocation4], 1

</llo_original>
